<compile_context>
chip_gen: v7x
topology: tpu7x:2x2x1
jax: 0.10.0
libtpu: 0.0.40
codegen_flags: <defaults>
</compile_context>

<pallas_src>
import functools

import jax
import jax.numpy as jnp
from jax import lax
from jax.experimental import pallas as pl
from jax.experimental.pallas import tpu as pltpu


# ---------------------------------------------------------------------------
# Kernel: lane-dense (width, batch) layout with block-diagonal packed weights.
#
#   x_p     : (G*input_size, TC)      -- G batch groups stacked on sublanes
#   w_in_p  : (G*width, G*input_size) -- block_diag(W_in) x G
#   w_h_p   : (G*width, G*width)      -- block_diag(W_h)  x G
#   w_out_p : (G,       G*width)      -- block_diag(W_out) x G
#   biases  : (G*width, 1) / (G, 1)   -- broadcast along lanes
#   out     : (G, TC)
# ---------------------------------------------------------------------------
def _mlp_kernel(x_ref, w_in_ref, b_in_ref, w_h_ref, b_h_ref, w_out_ref, b_out_ref,
                o_ref, *, num_layers):
    cd = w_h_ref.dtype   # operand dtype (f32 default; bf16 only worthwhile on v6e/v7x)

    # Input layer + ReLU: (G*W, G*in) @ (G*in, TC) -> (G*W, TC), f32 accumulate.
    h = jnp.dot(w_in_ref[...], x_ref[...].astype(cd),
                preferred_element_type=jnp.float32)
    h = jnp.maximum(h + b_in_ref[...], 0.0)

    # Hoist the hidden-bias broadcast out of the layer loop (no CSE of
    # broadcast_in_dim in JAX -> would otherwise re-materialize every layer).
    b_h = jnp.broadcast_to(b_h_ref[...], h.shape)

    def hidden_layer(hh):
        hh = jnp.dot(w_h_ref[...], hh.astype(cd),
                     preferred_element_type=jnp.float32)
        return jnp.maximum(hh + b_h, 0.0)

    if num_layers <= 16:
        for _ in range(num_layers):          # static unroll: full LLO visibility
            h = hidden_layer(h)
    else:
        h = lax.fori_loop(0, num_layers, lambda _, hh: hidden_layer(hh), h,
                          unroll=4)

    # Output layer: (G, G*W) @ (G*W, TC) -> (G, TC); lane-dense store.
    out = jnp.dot(w_out_ref[...], h.astype(cd),
                  preferred_element_type=jnp.float32)
    o_ref[...] = (out + b_out_ref[...]).astype(o_ref.dtype)


# ---------------------------------------------------------------------------
# One-time parameter layout prep (hoisted out of the per-call forward).
# PyTorch Linear layout in: weight (out, in), bias (out,).
# ---------------------------------------------------------------------------
def prepare_params(w_in, b_in, w_h, b_h, w_out, b_out, *, groups=None,
                   param_dtype=jnp.float32):
    """Pack params once.

    groups (G): batch groups packed block-diagonally so the hidden matmul
    presents a (G*width, G*width) operand to the MXU. Default fills a 256-wide
    tile (v6e/v7x); pass groups=4 on v5e (128-wide MXU).
    Keep param_dtype=float32 on v5e (no bf16 VPU); bf16 is fine on v6e/v7x
    (loosen the test tolerance if you use it).
    """
    w_in = jnp.asarray(w_in, jnp.float32)     # (width, input_size)
    w_h = jnp.asarray(w_h, jnp.float32)       # (width, width)
    w_out = jnp.asarray(w_out, jnp.float32)   # (1, width)
    width = w_h.shape[0]
    if groups is None:
        groups = max(1, 256 // width)
    eye = jnp.eye(groups, dtype=jnp.float32)
    tile_col = lambda b: jnp.tile(jnp.asarray(b, jnp.float32), groups).reshape(-1, 1)
    return {
        "w_in_p": jnp.kron(eye, w_in).astype(param_dtype),    # (G*W, G*in)
        "b_in_p": tile_col(b_in),                             # (G*W, 1)
        "w_h_p": jnp.kron(eye, w_h).astype(param_dtype),      # (G*W, G*W)
        "b_h_p": tile_col(b_h),                               # (G*W, 1)
        "w_out_p": jnp.kron(eye, w_out).astype(param_dtype),  # (G, G*W)
        "b_out_p": tile_col(b_out),                           # (G, 1)
    }


def _choose_tile(batch, groups, block_c):
    """Pick (tc, nb): lane tile per group and number of grid steps."""
    tc = max(128, block_c)
    # Keep >= 2 grid steps when the batch is big enough so ("parallel",)
    # actually shards across v7x's two TensorCores.
    while tc > 128 and pl.cdiv(batch, groups * tc) < 2:
        tc //= 2
    if batch <= groups * tc:
        # Single grid step: block == full array, so no 128-multiple requirement.
        tc = pl.cdiv(batch, groups)
    nb = pl.cdiv(batch, groups * tc)
    return tc, nb


# ---------------------------------------------------------------------------
# Forward wrapper
# ---------------------------------------------------------------------------
@functools.partial(jax.jit, static_argnames=("num_layers", "block_c"))
def mlp_forward(x, params, *, num_layers, block_c=512):
    """x: (B, input_size) float32. Returns (B, 1) in x.dtype."""
    B, input_size = x.shape
    G = params["w_out_p"].shape[0]            # packing factor (static from shapes)
    tc, nb = _choose_tile(B, G, block_c)
    b_pad = nb * G * tc

    # NOTE: padded rows are zeros; they become relu(b_in) downstream, which is
    # harmless because the padded outputs are sliced off below.
    xp = x if b_pad == B else jnp.pad(x, ((0, b_pad - B), (0, 0)))
    # (B_pad, in) -> (nb, G*in, tc): groups on sublanes, batch on lanes.
    # Lane-contiguous layout -> large DMA runs instead of 16-byte strided reads.
    xp = (xp.reshape(nb, G, tc, input_size)
            .transpose(0, 1, 3, 2)
            .reshape(nb, G * input_size, tc))

    kernel = functools.partial(_mlp_kernel, num_layers=num_layers)
    # Weights/biases: full-array blocks, VMEM-resident across all grid steps.
    full = lambda a: pl.BlockSpec(a.shape, lambda i: (0,) * a.ndim)

    out = pl.pallas_call(
        kernel,
        out_shape=jax.ShapeDtypeStruct((nb, G, tc), x.dtype),
        grid_spec=pltpu.PrefetchScalarGridSpec(
            num_scalar_prefetch=0,
            grid=(nb,),
            in_specs=[
                pl.BlockSpec((None, G * input_size, tc), lambda i: (i, 0, 0)),  # x
                full(params["w_in_p"]), full(params["b_in_p"]),
                full(params["w_h_p"]), full(params["b_h_p"]),
                full(params["w_out_p"]), full(params["b_out_p"]),
            ],
            out_specs=pl.BlockSpec((None, G, tc), lambda i: (i, 0, 0)),
        ),
        compiler_params=pltpu.CompilerParams(
            dimension_semantics=("parallel",)),
    )(xp, params["w_in_p"], params["b_in_p"], params["w_h_p"], params["b_h_p"],
      params["w_out_p"], params["b_out_p"])

    # (nb, G, tc) row-major is exactly batch order: slice padding, reshape (B, 1).
    return out.reshape(b_pad, 1)[:B]


# ---------------------------------------------------------------------------
# Pure-JAX reference (PyTorch-layout weights)
# ---------------------------------------------------------------------------
def reference_forward(x, w_in, b_in, w_h, b_h, w_out, b_out, *, num_layers):
    h = jnp.maximum(x @ w_in.T + b_in, 0.0)
    for _ in range(num_layers):
        h = jnp.maximum(h @ w_h.T + b_h, 0.0)
    return h @ w_out.T + b_out


if __name__ == "__main__":
    # Module hyper-params (small, consistent with the torch __init__).
    input_size = 4
    width = 32
    num_layers = 2

    key = jax.random.PRNGKey(0)
    k = jax.random.split(key, 9)

    # Deterministic synthetic params, PyTorch Linear layout: weight (out, in), bias (out,)
    def uinit(kk, shape, fan_in):
        bound = 1.0 / jnp.sqrt(fan_in)
        return jax.random.uniform(kk, shape, jnp.float32, -bound, bound)

    w_in = uinit(k[0], (width, input_size), input_size)
    b_in = uinit(k[1], (width,), input_size)
    w_h = uinit(k[2], (width, width), width)
    b_h = uinit(k[3], (width,), width)
    w_out = uinit(k[4], (1, width), width)
    b_out = uinit(k[5], (1,), width)

    # Pack parameter layout ONCE (block-diagonal G=8 -> 256-wide MXU tile).
    params = prepare_params(w_in, b_in, w_h, b_h, w_out, b_out)

    def check(x, block_c=512):
        pred = jax.block_until_ready(
            mlp_forward(x, params, num_layers=num_layers, block_c=block_c))
        ref = reference_forward(x, w_in, b_in, w_h, b_h, w_out, b_out,
                                num_layers=num_layers)
        assert pred.shape == ref.shape, (pred.shape, ref.shape)
        err = float(jnp.max(jnp.abs(pred - ref)))
        assert jnp.allclose(pred, ref, atol=1e-4, rtol=1e-4), err

    # Case 1: tiny batch -> single grid step, degenerate lane tile.
    check(jax.random.normal(k[6], (8, input_size), jnp.float32))
    # Case 2: medium batch -> single grid step, packed groups.
    check(jax.random.normal(k[7], (256, input_size), jnp.float32))
    # Case 3: larger batch -> multi-step "parallel" grid + batch padding.
    check(jax.random.normal(k[8], (4224, input_size), jnp.float32), block_c=256)

    print("KERNEL_OK")
</pallas_src>

<mosaic_0001>
module attributes {stable_mosaic.version = 11 : i64} {
  func.func @_mlp_kernel(%arg0: i32, %arg1: memref<1x32x1xf32, #tpu.memory_space<vmem>>, %arg2: memref<256x32xf32, #tpu.memory_space<vmem>>, %arg3: memref<256x1xf32, #tpu.memory_space<vmem>>, %arg4: memref<256x256xf32, #tpu.memory_space<vmem>>, %arg5: memref<256x1xf32, #tpu.memory_space<vmem>>, %arg6: memref<8x256xf32, #tpu.memory_space<vmem>>, %arg7: memref<8x1xf32, #tpu.memory_space<vmem>>, %arg8: memref<1x8x1xf32, #tpu.memory_space<vmem>>) attributes {dimension_semantics = [#tpu.dimension_semantics<parallel>], iteration_bounds = array<i64: 1>, scalar_prefetch = 0 : i64, scratch_operands = 0 : i64, tpu.core_type = #tpu.core_type<tc>, window_params = [{transform_indices = @transform_0, window_bounds = array<i64: 1, 32, 1>}, {pipeline_mode = #tpu.pipeline_mode<synchronous>, transform_indices = @transform_1, window_bounds = array<i64: 256, 32>}, {pipeline_mode = #tpu.pipeline_mode<synchronous>, transform_indices = @transform_2, window_bounds = array<i64: 256, 1>}, {pipeline_mode = #tpu.pipeline_mode<synchronous>, transform_indices = @transform_3, window_bounds = array<i64: 256, 256>}, {pipeline_mode = #tpu.pipeline_mode<synchronous>, transform_indices = @transform_4, window_bounds = array<i64: 256, 1>}, {pipeline_mode = #tpu.pipeline_mode<synchronous>, transform_indices = @transform_5, window_bounds = array<i64: 8, 256>}, {pipeline_mode = #tpu.pipeline_mode<synchronous>, transform_indices = @transform_6, window_bounds = array<i64: 8, 1>}, {transform_indices = @transform_7, window_bounds = array<i64: 1, 8, 1>}]} {
    %c0 = arith.constant 0 : index
    %c0_0 = arith.constant 0 : index
    %0 = vector.load %arg2[%c0, %c0_0] : memref<256x32xf32, #tpu.memory_space<vmem>>, vector<256x32xf32>
    %c0_1 = arith.constant 0 : index
    %c0_2 = arith.constant 0 : index
    %c0_3 = arith.constant 0 : index
    %1 = vector.load %arg1[%c0_1, %c0_2, %c0_3] : memref<1x32x1xf32, #tpu.memory_space<vmem>>, vector<1x32x1xf32>
    %2 = vector.shape_cast %1 : vector<1x32x1xf32> to vector<32x1xf32>
    %cst = arith.constant dense<0.000000e+00> : vector<256x1xf32>
    %3 = tpu.matmul %0, %2, %cst {dimension_numbers = #tpu.dot_dimension_numbers<[1], [0], [0], [1], [0, 0, 1, 1], [], []>} : vector<256x32xf32>, vector<32x1xf32>, vector<256x1xf32> -> vector<256x1xf32>
    %c0_4 = arith.constant 0 : index
    %c0_5 = arith.constant 0 : index
    %4 = vector.load %arg3[%c0_4, %c0_5] : memref<256x1xf32, #tpu.memory_space<vmem>>, vector<256x1xf32>
    %5 = arith.addf %3, %4 : vector<256x1xf32>
    %cst_6 = arith.constant 0.000000e+00 : f32
    %6 = vector.broadcast %cst_6 : f32 to vector<256x1xf32>
    %7 = arith.maximumf %5, %6 : vector<256x1xf32>
    %c0_7 = arith.constant 0 : index
    %c0_8 = arith.constant 0 : index
    %8 = vector.load %arg5[%c0_7, %c0_8] : memref<256x1xf32, #tpu.memory_space<vmem>>, vector<256x1xf32>
    %c0_9 = arith.constant 0 : index
    %c0_10 = arith.constant 0 : index
    %9 = vector.load %arg4[%c0_9, %c0_10] : memref<256x256xf32, #tpu.memory_space<vmem>>, vector<256x256xf32>
    %cst_11 = arith.constant dense<0.000000e+00> : vector<256x1xf32>
    %10 = tpu.matmul %9, %7, %cst_11 {dimension_numbers = #tpu.dot_dimension_numbers<[1], [0], [0], [1], [0, 0, 1, 1], [], []>} : vector<256x256xf32>, vector<256x1xf32>, vector<256x1xf32> -> vector<256x1xf32>
    %11 = arith.addf %10, %8 : vector<256x1xf32>
    %cst_12 = arith.constant 0.000000e+00 : f32
    %12 = vector.broadcast %cst_12 : f32 to vector<256x1xf32>
    %13 = arith.maximumf %11, %12 : vector<256x1xf32>
    %c0_13 = arith.constant 0 : index
    %c0_14 = arith.constant 0 : index
    %14 = vector.load %arg4[%c0_13, %c0_14] : memref<256x256xf32, #tpu.memory_space<vmem>>, vector<256x256xf32>
    %cst_15 = arith.constant dense<0.000000e+00> : vector<256x1xf32>
    %15 = tpu.matmul %14, %13, %cst_15 {dimension_numbers = #tpu.dot_dimension_numbers<[1], [0], [0], [1], [0, 0, 1, 1], [], []>} : vector<256x256xf32>, vector<256x1xf32>, vector<256x1xf32> -> vector<256x1xf32>
    %16 = arith.addf %15, %8 : vector<256x1xf32>
    %cst_16 = arith.constant 0.000000e+00 : f32
    %17 = vector.broadcast %cst_16 : f32 to vector<256x1xf32>
    %18 = arith.maximumf %16, %17 : vector<256x1xf32>
    %c0_17 = arith.constant 0 : index
    %c0_18 = arith.constant 0 : index
    %19 = vector.load %arg6[%c0_17, %c0_18] : memref<8x256xf32, #tpu.memory_space<vmem>>, vector<8x256xf32>
    %cst_19 = arith.constant dense<0.000000e+00> : vector<8x1xf32>
    %20 = tpu.matmul %19, %18, %cst_19 {dimension_numbers = #tpu.dot_dimension_numbers<[1], [0], [0], [1], [0, 0, 1, 1], [], []>} : vector<8x256xf32>, vector<256x1xf32>, vector<8x1xf32> -> vector<8x1xf32>
    %c0_20 = arith.constant 0 : index
    %c0_21 = arith.constant 0 : index
    %21 = vector.load %arg7[%c0_20, %c0_21] : memref<8x1xf32, #tpu.memory_space<vmem>>, vector<8x1xf32>
    %22 = arith.addf %20, %21 : vector<8x1xf32>
    %c0_22 = arith.constant 0 : index
    %c0_23 = arith.constant 0 : index
    %c0_24 = arith.constant 0 : index
    %23 = vector.load %arg8[%c0_22, %c0_23, %c0_24] : memref<1x8x1xf32, #tpu.memory_space<vmem>>, vector<1x8x1xf32>
    %24 = vector.shape_cast %23 : vector<1x8x1xf32> to vector<8x1xf32>
    %25 = vector.shape_cast %22 : vector<8x1xf32> to vector<1x8x1xf32>
    tpu.vector_store %arg8[%c0_22, %c0_23, %c0_24], %25 {strides = array<i32>} : memref<1x8x1xf32, #tpu.memory_space<vmem>>, vector<1x8x1xf32>,
    return
  }
  func.func @transform_0(%arg0: i32) -> (i32, i32, i32) {
    %c0_i32 = arith.constant 0 : i32
    %c0_i32_0 = arith.constant 0 : i32
    %c0_i32_1 = arith.constant 0 : i32
    return %arg0, %c0_i32, %c0_i32_0 : i32, i32, i32
  }
  func.func @transform_1(%arg0: i32) -> (i32, i32) {
    %c0_i32 = arith.constant 0 : i32
    %c0_i32_0 = arith.constant 0 : i32
    %c0_i32_1 = arith.constant 0 : i32
    return %c0_i32, %c0_i32_0 : i32, i32
  }
  func.func @transform_2(%arg0: i32) -> (i32, i32) {
    %c0_i32 = arith.constant 0 : i32
    %c0_i32_0 = arith.constant 0 : i32
    %c0_i32_1 = arith.constant 0 : i32
    return %c0_i32, %c0_i32_0 : i32, i32
  }
  func.func @transform_3(%arg0: i32) -> (i32, i32) {
    %c0_i32 = arith.constant 0 : i32
    %c0_i32_0 = arith.constant 0 : i32
    %c0_i32_1 = arith.constant 0 : i32
    return %c0_i32, %c0_i32_0 : i32, i32
  }
  func.func @transform_4(%arg0: i32) -> (i32, i32) {
    %c0_i32 = arith.constant 0 : i32
    %c0_i32_0 = arith.constant 0 : i32
    %c0_i32_1 = arith.constant 0 : i32
    return %c0_i32, %c0_i32_0 : i32, i32
  }
  func.func @transform_5(%arg0: i32) -> (i32, i32) {
    %c0_i32 = arith.constant 0 : i32
    %c0_i32_0 = arith.constant 0 : i32
    %c0_i32_1 = arith.constant 0 : i32
    return %c0_i32, %c0_i32_0 : i32, i32
  }
  func.func @transform_6(%arg0: i32) -> (i32, i32) {
    %c0_i32 = arith.constant 0 : i32
    %c0_i32_0 = arith.constant 0 : i32
    %c0_i32_1 = arith.constant 0 : i32
    return %c0_i32, %c0_i32_0 : i32, i32
  }
  func.func @transform_7(%arg0: i32) -> (i32, i32, i32) {
    %c0_i32 = arith.constant 0 : i32
    %c0_i32_0 = arith.constant 0 : i32
    %c0_i32_1 = arith.constant 0 : i32
    return %arg0, %c0_i32, %c0_i32_0 : i32, i32, i32
  }
}

</mosaic_0001>

<llo_original>
// kernel: mlp_forward.1
$region0: #{mlp_forward.1}
  #allocation0 [shape = 'u32[]', space=smem, size = 0x4, offset = 0x4, fixed_abs, tag = 'smem constant byte address 0x4 - core index']
  #allocation1 [shape = 'u32[144,128]{1,0:T(1,128)}', space=vmem, size = 0x12000, scoped, tag = 'internal scratch']
  %s0 = inlined_call_operand.vmem [shape: f32[1,32,1], index: 0, kind: input, shape index: {}]
  %s1 = inlined_call_operand.vmem [shape: f32[256,32], index: 1, kind: input, shape index: {}]
  %s2 = inlined_call_operand.vmem [shape: f32[256,1], index: 2, kind: input, shape index: {}]
  %s3 = inlined_call_operand.vmem [shape: f32[256,256], index: 3, kind: input, shape index: {}]
  %s4 = inlined_call_operand.vmem [shape: f32[256,1], index: 4, kind: input, shape index: {}]
  %s5 = inlined_call_operand.vmem [shape: f32[8,256], index: 5, kind: input, shape index: {}]
  %s6 = inlined_call_operand.vmem [shape: f32[8,1], index: 6, kind: input, shape index: {}]
  %s7 = inlined_call_operand.vmem [shape: f32[1,8,1], index: 7, kind: output, shape index: {}]
  %s8 = sld [smem:[#allocation0]]
  $region38: #{mlp_forward.1} parent=0
    _
  %s10 = ssub.s32 1, %s8
  %s11 = scalar_select 0, %s10, %s8
  // Predicated region
  $region2: #{mlp_forward.1} parent=0 // pred_check
    _
  $region3: #{mlp_forward.1} parent=0 // pred_check_branch
    %13 = sbr.rel (0) target = $region5
  $region4: #{mlp_forward.1} parent=0 // pred_region
    _
  $region5: #{mlp_forward.1} parent=0 // pred_fallthru
    _
  // Predicated region
  $region6: #{mlp_forward.1} parent=0 // pred_check
    _
  $region7: #{mlp_forward.1} parent=0 // pred_check_branch
    %15 = sbr.rel (0) target = $region9
  $region8: #{mlp_forward.1} parent=0 // pred_region
    _
  $region9: #{mlp_forward.1} parent=0 // pred_fallthru
    _
  // Predicated region
  $region10: #{mlp_forward.1} parent=0 // pred_check
    _
  $region11: #{mlp_forward.1} parent=0 // pred_check_branch
    %17 = sbr.rel (0) target = $region13
  $region12: #{mlp_forward.1} parent=0 // pred_region
    _
  $region13: #{mlp_forward.1} parent=0 // pred_fallthru
    _
  // Predicated region
  $region14: #{mlp_forward.1} parent=0 // pred_check
    _
  $region15: #{mlp_forward.1} parent=0 // pred_check_branch
    %19 = sbr.rel (0) target = $region17
  $region16: #{mlp_forward.1} parent=0 // pred_region
    _
  $region17: #{mlp_forward.1} parent=0 // pred_fallthru
    _
  // Predicated region
  $region18: #{mlp_forward.1} parent=0 // pred_check
    _
  $region19: #{mlp_forward.1} parent=0 // pred_check_branch
    %21 = sbr.rel (0) target = $region21
  $region20: #{mlp_forward.1} parent=0 // pred_region
    _
  $region21: #{mlp_forward.1} parent=0 // pred_fallthru
    _
  // Predicated region
  $region22: #{mlp_forward.1} parent=0 // pred_check
    _
  $region23: #{mlp_forward.1} parent=0 // pred_check_branch
    %23 = sbr.rel (0) target = $region25
  $region24: #{mlp_forward.1} parent=0 // pred_region
    _
  $region25: #{mlp_forward.1} parent=0 // pred_fallthru
    _
  // Predicated region
  $region26: #{mlp_forward.1} parent=0 // pred_check
    _
  $region27: #{mlp_forward.1} parent=0 // pred_check_branch
    %25 = sbr.rel (0) target = $region29
  $region28: #{mlp_forward.1} parent=0 // pred_region
    _
  $region29: #{mlp_forward.1} parent=0 // pred_fallthru
    _
  %v26 = vld [vmem:[%s1] sm:$0xff]
  %v27 = vld [vmem:[%s1 + $0x8] sm:$0xff]
  %v28 = vld [vmem:[%s1 + $0x10] sm:$0xff]
  %v29 = vld [vmem:[%s1 + $0x18] sm:$0xff]
  %v30 = vld [vmem:[%s1 + $0x20] sm:$0xff]
  %v31 = vld [vmem:[%s1 + $0x28] sm:$0xff]
  %v32 = vld [vmem:[%s1 + $0x30] sm:$0xff]
  %v33 = vld [vmem:[%s1 + $0x38] sm:$0xff]
  %v34 = vld [vmem:[%s1 + $0x40] sm:$0xff]
  %v35 = vld [vmem:[%s1 + $0x48] sm:$0xff]
  %v36 = vld [vmem:[%s1 + $0x50] sm:$0xff]
  %v37 = vld [vmem:[%s1 + $0x58] sm:$0xff]
  %v38 = vld [vmem:[%s1 + $0x60] sm:$0xff]
  %v39 = vld [vmem:[%s1 + $0x68] sm:$0xff]
  %v40 = vld [vmem:[%s1 + $0x70] sm:$0xff]
  %v41 = vld [vmem:[%s1 + $0x78] sm:$0xff]
  %v42 = vld [vmem:[%s1 + $0x80] sm:$0xff]
  %v43 = vld [vmem:[%s1 + $0x88] sm:$0xff]
  %v44 = vld [vmem:[%s1 + $0x90] sm:$0xff]
  %v45 = vld [vmem:[%s1 + $0x98] sm:$0xff]
  %v46 = vld [vmem:[%s1 + $0xa0] sm:$0xff]
  %v47 = vld [vmem:[%s1 + $0xa8] sm:$0xff]
  %v48 = vld [vmem:[%s1 + $0xb0] sm:$0xff]
  %v49 = vld [vmem:[%s1 + $0xb8] sm:$0xff]
  %v50 = vld [vmem:[%s1 + $0xc0] sm:$0xff]
  %v51 = vld [vmem:[%s1 + $0xc8] sm:$0xff]
  %v52 = vld [vmem:[%s1 + $0xd0] sm:$0xff]
  %v53 = vld [vmem:[%s1 + $0xd8] sm:$0xff]
  %v54 = vld [vmem:[%s1 + $0xe0] sm:$0xff]
  %v55 = vld [vmem:[%s1 + $0xe8] sm:$0xff]
  %v56 = vld [vmem:[%s1 + $0xf0] sm:$0xff]
  %v57 = vld [vmem:[%s1 + $0xf8] sm:$0xff]
  %v58 = vld [vmem:[%s0] sm:$0xff]
  %v59 = vld [vmem:[%s0 + $0x8] sm:$0xff]
  %v60 = vld [vmem:[%s0 + $0x10] sm:$0xff]
  %v61 = vld [vmem:[%s0 + $0x18] sm:$0xff]
  %v62 = vld [vmem:[%s2] sm:$0xff]
  %v63 = vld [vmem:[%s2 + $0x8] sm:$0xff]
  %v64 = vld [vmem:[%s2 + $0x10] sm:$0xff]
  %v65 = vld [vmem:[%s2 + $0x18] sm:$0xff]
  %v66 = vld [vmem:[%s2 + $0x20] sm:$0xff]
  %v67 = vld [vmem:[%s2 + $0x28] sm:$0xff]
  %v68 = vld [vmem:[%s2 + $0x30] sm:$0xff]
  %v69 = vld [vmem:[%s2 + $0x38] sm:$0xff]
  %v70 = vld [vmem:[%s2 + $0x40] sm:$0xff]
  %v71 = vld [vmem:[%s2 + $0x48] sm:$0xff]
  %v72 = vld [vmem:[%s2 + $0x50] sm:$0xff]
  %v73 = vld [vmem:[%s2 + $0x58] sm:$0xff]
  %v74 = vld [vmem:[%s2 + $0x60] sm:$0xff]
  %v75 = vld [vmem:[%s2 + $0x68] sm:$0xff]
  %v76 = vld [vmem:[%s2 + $0x70] sm:$0xff]
  %v77 = vld [vmem:[%s2 + $0x78] sm:$0xff]
  %v78 = vld [vmem:[%s2 + $0x80] sm:$0xff]
  %v79 = vld [vmem:[%s2 + $0x88] sm:$0xff]
  %v80 = vld [vmem:[%s2 + $0x90] sm:$0xff]
  %v81 = vld [vmem:[%s2 + $0x98] sm:$0xff]
  %v82 = vld [vmem:[%s2 + $0xa0] sm:$0xff]
  %v83 = vld [vmem:[%s2 + $0xa8] sm:$0xff]
  %v84 = vld [vmem:[%s2 + $0xb0] sm:$0xff]
  %v85 = vld [vmem:[%s2 + $0xb8] sm:$0xff]
  %v86 = vld [vmem:[%s2 + $0xc0] sm:$0xff]
  %v87 = vld [vmem:[%s2 + $0xc8] sm:$0xff]
  %v88 = vld [vmem:[%s2 + $0xd0] sm:$0xff]
  %v89 = vld [vmem:[%s2 + $0xd8] sm:$0xff]
  %v90 = vld [vmem:[%s2 + $0xe0] sm:$0xff]
  %v91 = vld [vmem:[%s2 + $0xe8] sm:$0xff]
  %v92 = vld [vmem:[%s2 + $0xf0] sm:$0xff]
  %v93 = vld [vmem:[%s2 + $0xf8] sm:$0xff]
  %vm94 = vcmask 261120
  %v96 = vsel %vm94, %v26, 0
  %v99 = vsel %vm94, %v27, 0
  %v102 = vsel %vm94, %v28, 0
  %v105 = vsel %vm94, %v29, 0
  %v108 = vsel %vm94, %v30, 0
  %v111 = vsel %vm94, %v31, 0
  %v114 = vsel %vm94, %v32, 0
  %v117 = vsel %vm94, %v33, 0
  %v120 = vsel %vm94, %v34, 0
  %v123 = vsel %vm94, %v35, 0
  %v126 = vsel %vm94, %v36, 0
  %v129 = vsel %vm94, %v37, 0
  %v132 = vsel %vm94, %v38, 0
  %v135 = vsel %vm94, %v39, 0
  %v138 = vsel %vm94, %v40, 0
  %v141 = vsel %vm94, %v41, 0
  %v144 = vsel %vm94, %v42, 0
  %v147 = vsel %vm94, %v43, 0
  %v150 = vsel %vm94, %v44, 0
  %v153 = vsel %vm94, %v45, 0
  %v156 = vsel %vm94, %v46, 0
  %v159 = vsel %vm94, %v47, 0
  %v162 = vsel %vm94, %v48, 0
  %v165 = vsel %vm94, %v49, 0
  %v168 = vsel %vm94, %v50, 0
  %v171 = vsel %vm94, %v51, 0
  %v174 = vsel %vm94, %v52, 0
  %v177 = vsel %vm94, %v53, 0
  %v180 = vsel %vm94, %v54, 0
  %v183 = vsel %vm94, %v55, 0
  %v186 = vsel %vm94, %v56, 0
  %v189 = vsel %vm94, %v57, 0
  %191 = vmatprep.subr.mxu0 0.0
  %192 = vmatpush1.msra.mxu0 %v58
  %193 = vmatprep.subr.mxu0 0.0
  %194 = vmatpush1.msra.mxu0 %v59
  %195 = vmatprep.subr.mxu0 0.0
  %196 = vmatpush1.msra.mxu0 %v60
  %197 = vmatprep.subr.mxu0 0.0
  %198 = vmatpush1.msra.mxu0 %v61
  %199 = vmatprep.subr.mxu0 0.0
  %200 = vmatpush1.msra.mxu0 0.0
  %201 = vmatprep.subr.mxu0 0.0
  %202 = vmatpush1.msra.mxu0 0.0
  %203 = vmatprep.subr.mxu0 0.0
  %204 = vmatpush1.msra.mxu0 0.0
  %205 = vmatprep.subr.mxu0 0.0
  %206 = vmatpush1.msra.mxu0 0.0
  %207 = vmatprep.subr.mxu0 0.0
  %208 = vmatpush1.msra.mxu0 0.0
  %209 = vmatprep.subr.mxu0 0.0
  %210 = vmatpush1.msra.mxu0 0.0
  %211 = vmatprep.subr.mxu0 0.0
  %212 = vmatpush1.msra.mxu0 0.0
  %213 = vmatprep.subr.mxu0 0.0
  %214 = vmatpush1.msra.mxu0 0.0
  %215 = vmatprep.subr.mxu0 0.0
  %216 = vmatpush1.msra.mxu0 0.0
  %217 = vmatprep.subr.mxu0 0.0
  %218 = vmatpush1.msra.mxu0 0.0
  %219 = vmatprep.subr.mxu0 0.0
  %220 = vmatpush1.msra.mxu0 0.0
  %221 = vmatprep.subr.mxu0 0.0
  %222 = vmatpush1.msra.mxu0 0.0
  %223 = vmatprep.subr.mxu0 0.0
  %224 = vmatpush1.msra.mxu0 0.0
  %225 = vmatprep.subr.mxu0 0.0
  %226 = vmatpush1.msra.mxu0 0.0
  %227 = vmatprep.subr.mxu0 0.0
  %228 = vmatpush1.msra.mxu0 0.0
  %229 = vmatprep.subr.mxu0 0.0
  %230 = vmatpush1.msra.mxu0 0.0
  %231 = vmatprep.subr.mxu0 0.0
  %232 = vmatpush1.msra.mxu0 0.0
  %233 = vmatprep.subr.mxu0 0.0
  %234 = vmatpush1.msra.mxu0 0.0
  %235 = vmatprep.subr.mxu0 0.0
  %236 = vmatpush1.msra.mxu0 0.0
  %237 = vmatprep.subr.mxu0 0.0
  %238 = vmatpush1.msra.mxu0 0.0
  %239 = vmatprep.subr.mxu0 0.0
  %240 = vmatpush1.msra.mxu0 0.0
  %241 = vmatprep.subr.mxu0 0.0
  %242 = vmatpush1.msra.mxu0 0.0
  %243 = vmatprep.subr.mxu0 0.0
  %244 = vmatpush1.msra.mxu0 0.0
  %245 = vmatprep.subr.mxu0 0.0
  %246 = vmatpush1.msra.mxu0 0.0
  %247 = vmatprep.subr.mxu0 0.0
  %248 = vmatpush1.msra.mxu0 0.0
  %249 = vmatprep.subr.mxu0 0.0
  %250 = vmatpush1.msra.mxu0 0.0
  %251 = vmatprep.subr.mxu0 0.0
  %252 = vmatpush1.msra.mxu0 0.0
  %253 = vmatprep.subr.mxu0 0.0
  %254 = vmatpush1.msra.mxu0 0.0
  %255 = vmatprep.mubr.f32.mxu0 0.0
  %256 = vmatmul.mubr.f32.gmra.mrb[0].mxu0 %v96
  %v257 = vpop.f32.mrb[0].mxu0
  %v258 = vadd.f32 %v62, %v257
  %v259 = vpop.f32.mrb[0].mxu0
  %260 = vmatprep.mubr.f32.mxu0 0.0
  %261 = vmatmul.mubr.f32.gmra.mrb[0].mxu0 %v99
  %v262 = vpop.f32.mrb[0].mxu0
  %v263 = vadd.f32 %v63, %v262
  %v264 = vpop.f32.mrb[0].mxu0
  %265 = vmatprep.mubr.f32.mxu0 0.0
  %266 = vmatmul.mubr.f32.gmra.mrb[0].mxu0 %v102
  %v267 = vpop.f32.mrb[0].mxu0
  %v268 = vadd.f32 %v64, %v267
  %v269 = vpop.f32.mrb[0].mxu0
  %270 = vmatprep.mubr.f32.mxu0 0.0
  %271 = vmatmul.mubr.f32.gmra.mrb[0].mxu0 %v105
  %v272 = vpop.f32.mrb[0].mxu0
  %v273 = vadd.f32 %v65, %v272
  %v274 = vpop.f32.mrb[0].mxu0
  %275 = vmatprep.mubr.f32.mxu0 0.0
  %276 = vmatmul.mubr.f32.gmra.mrb[0].mxu0 %v108
  %v277 = vpop.f32.mrb[0].mxu0
  %v278 = vadd.f32 %v66, %v277
  %v279 = vpop.f32.mrb[0].mxu0
  %280 = vmatprep.mubr.f32.mxu0 0.0
  %281 = vmatmul.mubr.f32.gmra.mrb[0].mxu0 %v111
  %v282 = vpop.f32.mrb[0].mxu0
  %v283 = vadd.f32 %v67, %v282
  %v284 = vpop.f32.mrb[0].mxu0
  %285 = vmatprep.mubr.f32.mxu0 0.0
  %286 = vmatmul.mubr.f32.gmra.mrb[0].mxu0 %v114
  %v287 = vpop.f32.mrb[0].mxu0
  %v288 = vadd.f32 %v68, %v287
  %v289 = vpop.f32.mrb[0].mxu0
  %290 = vmatprep.mubr.f32.mxu0 0.0
  %291 = vmatmul.mubr.f32.gmra.mrb[0].mxu0 %v117
  %v292 = vpop.f32.mrb[0].mxu0
  %v293 = vadd.f32 %v69, %v292
  %v294 = vpop.f32.mrb[0].mxu0
  %295 = vmatprep.mubr.f32.mxu0 0.0
  %296 = vmatmul.mubr.f32.gmra.mrb[0].mxu0 %v120
  %v297 = vpop.f32.mrb[0].mxu0
  %v298 = vadd.f32 %v70, %v297
  %v299 = vpop.f32.mrb[0].mxu0
  %300 = vmatprep.mubr.f32.mxu0 0.0
  %301 = vmatmul.mubr.f32.gmra.mrb[0].mxu0 %v123
  %v302 = vpop.f32.mrb[0].mxu0
  %v303 = vadd.f32 %v71, %v302
  %v304 = vpop.f32.mrb[0].mxu0
  %305 = vmatprep.mubr.f32.mxu0 0.0
  %306 = vmatmul.mubr.f32.gmra.mrb[0].mxu0 %v126
  %v307 = vpop.f32.mrb[0].mxu0
  %v308 = vadd.f32 %v72, %v307
  %v309 = vpop.f32.mrb[0].mxu0
  %310 = vmatprep.mubr.f32.mxu0 0.0
  %311 = vmatmul.mubr.f32.gmra.mrb[0].mxu0 %v129
  %v312 = vpop.f32.mrb[0].mxu0
  %v313 = vadd.f32 %v73, %v312
  %v314 = vpop.f32.mrb[0].mxu0
  %315 = vmatprep.mubr.f32.mxu0 0.0
  %316 = vmatmul.mubr.f32.gmra.mrb[0].mxu0 %v132
  %v317 = vpop.f32.mrb[0].mxu0
  %v318 = vadd.f32 %v74, %v317
  %v319 = vpop.f32.mrb[0].mxu0
  %320 = vmatprep.mubr.f32.mxu0 0.0
  %321 = vmatmul.mubr.f32.gmra.mrb[0].mxu0 %v135
  %v322 = vpop.f32.mrb[0].mxu0
  %v323 = vadd.f32 %v75, %v322
  %v324 = vpop.f32.mrb[0].mxu0
  %325 = vmatprep.mubr.f32.mxu0 0.0
  %326 = vmatmul.mubr.f32.gmra.mrb[0].mxu0 %v138
  %v327 = vpop.f32.mrb[0].mxu0
  %v328 = vadd.f32 %v76, %v327
  %v329 = vpop.f32.mrb[0].mxu0
  %330 = vmatprep.mubr.f32.mxu0 0.0
  %331 = vmatmul.mubr.f32.gmra.mrb[0].mxu0 %v141
  %v332 = vpop.f32.mrb[0].mxu0
  %v333 = vadd.f32 %v77, %v332
  %v334 = vpop.f32.mrb[0].mxu0
  %335 = vmatprep.mubr.f32.mxu0 0.0
  %336 = vmatmul.mubr.f32.gmra.mrb[0].mxu0 %v144
  %v337 = vpop.f32.mrb[0].mxu0
  %v338 = vadd.f32 %v78, %v337
  %v339 = vpop.f32.mrb[0].mxu0
  %340 = vmatprep.mubr.f32.mxu0 0.0
  %341 = vmatmul.mubr.f32.gmra.mrb[0].mxu0 %v147
  %v342 = vpop.f32.mrb[0].mxu0
  %v343 = vadd.f32 %v79, %v342
  %v344 = vpop.f32.mrb[0].mxu0
  %345 = vmatprep.mubr.f32.mxu0 0.0
  %346 = vmatmul.mubr.f32.gmra.mrb[0].mxu0 %v150
  %v347 = vpop.f32.mrb[0].mxu0
  %v348 = vadd.f32 %v80, %v347
  %v349 = vpop.f32.mrb[0].mxu0
  %350 = vmatprep.mubr.f32.mxu0 0.0
  %351 = vmatmul.mubr.f32.gmra.mrb[0].mxu0 %v153
  %v352 = vpop.f32.mrb[0].mxu0
  %v353 = vadd.f32 %v81, %v352
  %v354 = vpop.f32.mrb[0].mxu0
  %355 = vmatprep.mubr.f32.mxu0 0.0
  %356 = vmatmul.mubr.f32.gmra.mrb[0].mxu0 %v156
  %v357 = vpop.f32.mrb[0].mxu0
  %v358 = vadd.f32 %v82, %v357
  %v359 = vpop.f32.mrb[0].mxu0
  %360 = vmatprep.mubr.f32.mxu0 0.0
  %361 = vmatmul.mubr.f32.gmra.mrb[0].mxu0 %v159
  %v362 = vpop.f32.mrb[0].mxu0
  %v363 = vadd.f32 %v83, %v362
  %v364 = vpop.f32.mrb[0].mxu0
  %365 = vmatprep.mubr.f32.mxu0 0.0
  %366 = vmatmul.mubr.f32.gmra.mrb[0].mxu0 %v162
  %v367 = vpop.f32.mrb[0].mxu0
  %v368 = vadd.f32 %v84, %v367
  %v369 = vpop.f32.mrb[0].mxu0
  %370 = vmatprep.mubr.f32.mxu0 0.0
  %371 = vmatmul.mubr.f32.gmra.mrb[0].mxu0 %v165
  %v372 = vpop.f32.mrb[0].mxu0
  %v373 = vadd.f32 %v85, %v372
  %v374 = vpop.f32.mrb[0].mxu0
  %375 = vmatprep.mubr.f32.mxu0 0.0
  %376 = vmatmul.mubr.f32.gmra.mrb[0].mxu0 %v168
  %v377 = vpop.f32.mrb[0].mxu0
  %v378 = vadd.f32 %v86, %v377
  %v379 = vpop.f32.mrb[0].mxu0
  %380 = vmatprep.mubr.f32.mxu0 0.0
  %381 = vmatmul.mubr.f32.gmra.mrb[0].mxu0 %v171
  %v382 = vpop.f32.mrb[0].mxu0
  %v383 = vadd.f32 %v87, %v382
  %v384 = vpop.f32.mrb[0].mxu0
  %385 = vmatprep.mubr.f32.mxu0 0.0
  %386 = vmatmul.mubr.f32.gmra.mrb[0].mxu0 %v174
  %v387 = vpop.f32.mrb[0].mxu0
  %v388 = vadd.f32 %v88, %v387
  %v389 = vpop.f32.mrb[0].mxu0
  %390 = vmatprep.mubr.f32.mxu0 0.0
  %391 = vmatmul.mubr.f32.gmra.mrb[0].mxu0 %v177
  %v392 = vpop.f32.mrb[0].mxu0
  %v393 = vadd.f32 %v89, %v392
  %v394 = vpop.f32.mrb[0].mxu0
  %395 = vmatprep.mubr.f32.mxu0 0.0
  %396 = vmatmul.mubr.f32.gmra.mrb[0].mxu0 %v180
  %v397 = vpop.f32.mrb[0].mxu0
  %v398 = vadd.f32 %v90, %v397
  %v399 = vpop.f32.mrb[0].mxu0
  %400 = vmatprep.mubr.f32.mxu0 0.0
  %401 = vmatmul.mubr.f32.gmra.mrb[0].mxu0 %v183
  %v402 = vpop.f32.mrb[0].mxu0
  %v403 = vadd.f32 %v91, %v402
  %v404 = vpop.f32.mrb[0].mxu0
  %405 = vmatprep.mubr.f32.mxu0 0.0
  %406 = vmatmul.mubr.f32.gmra.mrb[0].mxu0 %v186
  %v407 = vpop.f32.mrb[0].mxu0
  %v408 = vadd.f32 %v92, %v407
  %v409 = vpop.f32.mrb[0].mxu0
  %410 = vmatprep.mubr.f32.mxu0 0.0
  %411 = vmatmul.mubr.f32.gmra.mrb[0].mxu0 %v189
  %v412 = vpop.f32.mrb[0].mxu0
  %v413 = vadd.f32 %v93, %v412
  %v414 = vpop.f32.mrb[0].mxu0
  %415 = vdwg.mxu0
  %v416 = vmax.f32 %v258, 0.0
  %v417 = vmax.f32 %v263, 0.0
  %v418 = vmax.f32 %v268, 0.0
  %v419 = vmax.f32 %v273, 0.0
  %v420 = vmax.f32 %v278, 0.0
  %v421 = vmax.f32 %v283, 0.0
  %v422 = vmax.f32 %v288, 0.0
  %v423 = vmax.f32 %v293, 0.0
  %v424 = vmax.f32 %v298, 0.0
  %v425 = vmax.f32 %v303, 0.0
  %v426 = vmax.f32 %v308, 0.0
  %v427 = vmax.f32 %v313, 0.0
  %v428 = vmax.f32 %v318, 0.0
  %v429 = vmax.f32 %v323, 0.0
  %v430 = vmax.f32 %v328, 0.0
  %v431 = vmax.f32 %v333, 0.0
  %v432 = vmax.f32 %v338, 0.0
  %v433 = vmax.f32 %v343, 0.0
  %v434 = vmax.f32 %v348, 0.0
  %v435 = vmax.f32 %v353, 0.0
  %v436 = vmax.f32 %v358, 0.0
  %v437 = vmax.f32 %v363, 0.0
  %v438 = vmax.f32 %v368, 0.0
  %v439 = vmax.f32 %v373, 0.0
  %v440 = vmax.f32 %v378, 0.0
  %v441 = vmax.f32 %v383, 0.0
  %v442 = vmax.f32 %v388, 0.0
  %v443 = vmax.f32 %v393, 0.0
  %v444 = vmax.f32 %v398, 0.0
  %v445 = vmax.f32 %v403, 0.0
  %v446 = vmax.f32 %v408, 0.0
  %v447 = vmax.f32 %v413, 0.0
  %v448 = vld [vmem:[%s4] sm:$0xff]
  %v449 = vld [vmem:[%s4 + $0x8] sm:$0xff]
  %v450 = vld [vmem:[%s4 + $0x10] sm:$0xff]
  %v451 = vld [vmem:[%s4 + $0x18] sm:$0xff]
  %v452 = vld [vmem:[%s4 + $0x20] sm:$0xff]
  %v453 = vld [vmem:[%s4 + $0x28] sm:$0xff]
  %v454 = vld [vmem:[%s4 + $0x30] sm:$0xff]
  %v455 = vld [vmem:[%s4 + $0x38] sm:$0xff]
  %v456 = vld [vmem:[%s4 + $0x40] sm:$0xff]
  %v457 = vld [vmem:[%s4 + $0x48] sm:$0xff]
  %v458 = vld [vmem:[%s4 + $0x50] sm:$0xff]
  %v459 = vld [vmem:[%s4 + $0x58] sm:$0xff]
  %v460 = vld [vmem:[%s4 + $0x60] sm:$0xff]
  %v461 = vld [vmem:[%s4 + $0x68] sm:$0xff]
  %v462 = vld [vmem:[%s4 + $0x70] sm:$0xff]
  %v463 = vld [vmem:[%s4 + $0x78] sm:$0xff]
  %v464 = vld [vmem:[%s4 + $0x80] sm:$0xff]
  %v465 = vld [vmem:[%s4 + $0x88] sm:$0xff]
  %v466 = vld [vmem:[%s4 + $0x90] sm:$0xff]
  %v467 = vld [vmem:[%s4 + $0x98] sm:$0xff]
  %v468 = vld [vmem:[%s4 + $0xa0] sm:$0xff]
  %v469 = vld [vmem:[%s4 + $0xa8] sm:$0xff]
  %v470 = vld [vmem:[%s4 + $0xb0] sm:$0xff]
  %v471 = vld [vmem:[%s4 + $0xb8] sm:$0xff]
  %v472 = vld [vmem:[%s4 + $0xc0] sm:$0xff]
  %v473 = vld [vmem:[%s4 + $0xc8] sm:$0xff]
  %v474 = vld [vmem:[%s4 + $0xd0] sm:$0xff]
  %v475 = vld [vmem:[%s4 + $0xd8] sm:$0xff]
  %v476 = vld [vmem:[%s4 + $0xe0] sm:$0xff]
  %v477 = vld [vmem:[%s4 + $0xe8] sm:$0xff]
  %v478 = vld [vmem:[%s4 + $0xf0] sm:$0xff]
  %v479 = vld [vmem:[%s4 + $0xf8] sm:$0xff]
  %v480 = vld [vmem:[%s3] sm:$0xff]
  %v481 = vld [vmem:[%s3 + $0x8] sm:$0xff]
  %v482 = vld [vmem:[%s3 + $0x10] sm:$0xff]
  %v483 = vld [vmem:[%s3 + $0x18] sm:$0xff]
  %v484 = vld [vmem:[%s3 + $0x20] sm:$0xff]
  %v485 = vld [vmem:[%s3 + $0x28] sm:$0xff]
  %v486 = vld [vmem:[%s3 + $0x30] sm:$0xff]
  %v487 = vld [vmem:[%s3 + $0x38] sm:$0xff]
  %v488 = vld [vmem:[%s3 + $0x40] sm:$0xff]
  %v489 = vld [vmem:[%s3 + $0x48] sm:$0xff]
  %v490 = vld [vmem:[%s3 + $0x50] sm:$0xff]
  %v491 = vld [vmem:[%s3 + $0x58] sm:$0xff]
  %v492 = vld [vmem:[%s3 + $0x60] sm:$0xff]
  %v493 = vld [vmem:[%s3 + $0x68] sm:$0xff]
  %v494 = vld [vmem:[%s3 + $0x70] sm:$0xff]
  %v495 = vld [vmem:[%s3 + $0x78] sm:$0xff]
  %v496 = vld [vmem:[%s3 + $0x80] sm:$0xff]
  %v497 = vld [vmem:[%s3 + $0x88] sm:$0xff]
  %v498 = vld [vmem:[%s3 + $0x90] sm:$0xff]
  %v499 = vld [vmem:[%s3 + $0x98] sm:$0xff]
  %v500 = vld [vmem:[%s3 + $0xa0] sm:$0xff]
  %v501 = vld [vmem:[%s3 + $0xa8] sm:$0xff]
  %v502 = vld [vmem:[%s3 + $0xb0] sm:$0xff]
  %v503 = vld [vmem:[%s3 + $0xb8] sm:$0xff]
  %v504 = vld [vmem:[%s3 + $0xc0] sm:$0xff]
  %v505 = vld [vmem:[%s3 + $0xc8] sm:$0xff]
  %v506 = vld [vmem:[%s3 + $0xd0] sm:$0xff]
  %v507 = vld [vmem:[%s3 + $0xd8] sm:$0xff]
  %v508 = vld [vmem:[%s3 + $0xe0] sm:$0xff]
  %v509 = vld [vmem:[%s3 + $0xe8] sm:$0xff]
  %v510 = vld [vmem:[%s3 + $0xf0] sm:$0xff]
  %v511 = vld [vmem:[%s3 + $0xf8] sm:$0xff]
  %v512 = vld [vmem:[%s3 + $0x100] sm:$0xff]
  %v513 = vld [vmem:[%s3 + $0x108] sm:$0xff]
  %v514 = vld [vmem:[%s3 + $0x110] sm:$0xff]
  %v515 = vld [vmem:[%s3 + $0x118] sm:$0xff]
  %v516 = vld [vmem:[%s3 + $0x120] sm:$0xff]
  %v517 = vld [vmem:[%s3 + $0x128] sm:$0xff]
  %v518 = vld [vmem:[%s3 + $0x130] sm:$0xff]
  %v519 = vld [vmem:[%s3 + $0x138] sm:$0xff]
  %v520 = vld [vmem:[%s3 + $0x140] sm:$0xff]
  %v521 = vld [vmem:[%s3 + $0x148] sm:$0xff]
  %v522 = vld [vmem:[%s3 + $0x150] sm:$0xff]
  %v523 = vld [vmem:[%s3 + $0x158] sm:$0xff]
  %v524 = vld [vmem:[%s3 + $0x160] sm:$0xff]
  %v525 = vld [vmem:[%s3 + $0x168] sm:$0xff]
  %v526 = vld [vmem:[%s3 + $0x170] sm:$0xff]
  %v527 = vld [vmem:[%s3 + $0x178] sm:$0xff]
  %v528 = vld [vmem:[%s3 + $0x180] sm:$0xff]
  %v529 = vld [vmem:[%s3 + $0x188] sm:$0xff]
  %v530 = vld [vmem:[%s3 + $0x190] sm:$0xff]
  %v531 = vld [vmem:[%s3 + $0x198] sm:$0xff]
  %v532 = vld [vmem:[%s3 + $0x1a0] sm:$0xff]
  %v533 = vld [vmem:[%s3 + $0x1a8] sm:$0xff]
  %v534 = vld [vmem:[%s3 + $0x1b0] sm:$0xff]
  %v535 = vld [vmem:[%s3 + $0x1b8] sm:$0xff]
  %v536 = vld [vmem:[%s3 + $0x1c0] sm:$0xff]
  %v537 = vld [vmem:[%s3 + $0x1c8] sm:$0xff]
  %v538 = vld [vmem:[%s3 + $0x1d0] sm:$0xff]
  %v539 = vld [vmem:[%s3 + $0x1d8] sm:$0xff]
  %v540 = vld [vmem:[%s3 + $0x1e0] sm:$0xff]
  %v541 = vld [vmem:[%s3 + $0x1e8] sm:$0xff]
  %v542 = vld [vmem:[%s3 + $0x1f0] sm:$0xff]
  %v543 = vld [vmem:[%s3 + $0x1f8] sm:$0xff]
  %544 = vmatprep.subr.mxu0 0.0
  %545 = vmatpush1.msra.mxu0 %v416
  %546 = vmatprep.subr.mxu0 0.0
  %547 = vmatpush1.msra.mxu0 %v417
  %548 = vmatprep.subr.mxu0 0.0
  %549 = vmatpush1.msra.mxu0 %v418
  %550 = vmatprep.subr.mxu0 0.0
  %551 = vmatpush1.msra.mxu0 %v419
  %552 = vmatprep.subr.mxu0 0.0
  %553 = vmatpush1.msra.mxu0 %v420
  %554 = vmatprep.subr.mxu0 0.0
  %555 = vmatpush1.msra.mxu0 %v421
  %556 = vmatprep.subr.mxu0 0.0
  %557 = vmatpush1.msra.mxu0 %v422
  %558 = vmatprep.subr.mxu0 0.0
  %559 = vmatpush1.msra.mxu0 %v423
  %560 = vmatprep.subr.mxu0 0.0
  %561 = vmatpush1.msra.mxu0 %v424
  %562 = vmatprep.subr.mxu0 0.0
  %563 = vmatpush1.msra.mxu0 %v425
  %564 = vmatprep.subr.mxu0 0.0
  %565 = vmatpush1.msra.mxu0 %v426
  %566 = vmatprep.subr.mxu0 0.0
  %567 = vmatpush1.msra.mxu0 %v427
  %568 = vmatprep.subr.mxu0 0.0
  %569 = vmatpush1.msra.mxu0 %v428
  %570 = vmatprep.subr.mxu0 0.0
  %571 = vmatpush1.msra.mxu0 %v429
  %572 = vmatprep.subr.mxu0 0.0
  %573 = vmatpush1.msra.mxu0 %v430
  %574 = vmatprep.subr.mxu0 0.0
  %575 = vmatpush1.msra.mxu0 %v431
  %576 = vmatprep.subr.mxu0 0.0
  %577 = vmatpush1.msra.mxu0 %v432
  %578 = vmatprep.subr.mxu0 0.0
  %579 = vmatpush1.msra.mxu0 %v433
  %580 = vmatprep.subr.mxu0 0.0
  %581 = vmatpush1.msra.mxu0 %v434
  %582 = vmatprep.subr.mxu0 0.0
  %583 = vmatpush1.msra.mxu0 %v435
  %584 = vmatprep.subr.mxu0 0.0
  %585 = vmatpush1.msra.mxu0 %v436
  %586 = vmatprep.subr.mxu0 0.0
  %587 = vmatpush1.msra.mxu0 %v437
  %588 = vmatprep.subr.mxu0 0.0
  %589 = vmatpush1.msra.mxu0 %v438
  %590 = vmatprep.subr.mxu0 0.0
  %591 = vmatpush1.msra.mxu0 %v439
  %592 = vmatprep.subr.mxu0 0.0
  %593 = vmatpush1.msra.mxu0 %v440
  %594 = vmatprep.subr.mxu0 0.0
  %595 = vmatpush1.msra.mxu0 %v441
  %596 = vmatprep.subr.mxu0 0.0
  %597 = vmatpush1.msra.mxu0 %v442
  %598 = vmatprep.subr.mxu0 0.0
  %599 = vmatpush1.msra.mxu0 %v443
  %600 = vmatprep.subr.mxu0 0.0
  %601 = vmatpush1.msra.mxu0 %v444
  %602 = vmatprep.subr.mxu0 0.0
  %603 = vmatpush1.msra.mxu0 %v445
  %604 = vmatprep.subr.mxu0 0.0
  %605 = vmatpush1.msra.mxu0 %v446
  %606 = vmatprep.subr.mxu0 0.0
  %607 = vmatpush1.msra.mxu0 %v447
  %608 = vmatprep.mubr.f32.mxu0 %v481
  %609 = vmatmul.mubr.f32.gmra.mrb[0].mxu0 %v480
  %v610 = vpop.f32.mrb[0].mxu0
  %v611 = vadd.f32 %v448, %v610
  %v612 = vpop.f32.mrb[0].mxu0
  %613 = vmatprep.mubr.f32.mxu0 %v483
  %614 = vmatmul.mubr.f32.gmra.mrb[0].mxu0 %v482
  %v615 = vpop.f32.mrb[0].mxu0
  %v616 = vadd.f32 %v449, %v615
  %v617 = vpop.f32.mrb[0].mxu0
  %618 = vmatprep.mubr.f32.mxu0 %v485
  %619 = vmatmul.mubr.f32.gmra.mrb[0].mxu0 %v484
  %v620 = vpop.f32.mrb[0].mxu0
  %v621 = vadd.f32 %v450, %v620
  %v622 = vpop.f32.mrb[0].mxu0
  %623 = vmatprep.mubr.f32.mxu0 %v487
  %624 = vmatmul.mubr.f32.gmra.mrb[0].mxu0 %v486
  %v625 = vpop.f32.mrb[0].mxu0
  %v626 = vadd.f32 %v451, %v625
  %v627 = vpop.f32.mrb[0].mxu0
  %628 = vmatprep.mubr.f32.mxu0 %v489
  %629 = vmatmul.mubr.f32.gmra.mrb[0].mxu0 %v488
  %v630 = vpop.f32.mrb[0].mxu0
  %v631 = vadd.f32 %v452, %v630
  %v632 = vpop.f32.mrb[0].mxu0
  %633 = vmatprep.mubr.f32.mxu0 %v491
  %634 = vmatmul.mubr.f32.gmra.mrb[0].mxu0 %v490
  %v635 = vpop.f32.mrb[0].mxu0
  %v636 = vadd.f32 %v453, %v635
  %v637 = vpop.f32.mrb[0].mxu0
  %638 = vmatprep.mubr.f32.mxu0 %v493
  %639 = vmatmul.mubr.f32.gmra.mrb[0].mxu0 %v492
  %v640 = vpop.f32.mrb[0].mxu0
  %v641 = vadd.f32 %v454, %v640
  %v642 = vpop.f32.mrb[0].mxu0
  %643 = vmatprep.mubr.f32.mxu0 %v495
  %644 = vmatmul.mubr.f32.gmra.mrb[0].mxu0 %v494
  %v645 = vpop.f32.mrb[0].mxu0
  %v646 = vadd.f32 %v455, %v645
  %v647 = vpop.f32.mrb[0].mxu0
  %648 = vmatprep.mubr.f32.mxu0 %v497
  %649 = vmatmul.mubr.f32.gmra.mrb[0].mxu0 %v496
  %v650 = vpop.f32.mrb[0].mxu0
  %v651 = vadd.f32 %v456, %v650
  %v652 = vpop.f32.mrb[0].mxu0
  %653 = vmatprep.mubr.f32.mxu0 %v499
  %654 = vmatmul.mubr.f32.gmra.mrb[0].mxu0 %v498
  %v655 = vpop.f32.mrb[0].mxu0
  %v656 = vadd.f32 %v457, %v655
  %v657 = vpop.f32.mrb[0].mxu0
  %658 = vmatprep.mubr.f32.mxu0 %v501
  %659 = vmatmul.mubr.f32.gmra.mrb[0].mxu0 %v500
  %v660 = vpop.f32.mrb[0].mxu0
  %v661 = vadd.f32 %v458, %v660
  %v662 = vpop.f32.mrb[0].mxu0
  %663 = vmatprep.mubr.f32.mxu0 %v503
  %664 = vmatmul.mubr.f32.gmra.mrb[0].mxu0 %v502
  %v665 = vpop.f32.mrb[0].mxu0
  %v666 = vadd.f32 %v459, %v665
  %v667 = vpop.f32.mrb[0].mxu0
  %668 = vmatprep.mubr.f32.mxu0 %v505
  %669 = vmatmul.mubr.f32.gmra.mrb[0].mxu0 %v504
  %v670 = vpop.f32.mrb[0].mxu0
  %v671 = vadd.f32 %v460, %v670
  %v672 = vpop.f32.mrb[0].mxu0
  %673 = vmatprep.mubr.f32.mxu0 %v507
  %674 = vmatmul.mubr.f32.gmra.mrb[0].mxu0 %v506
  %v675 = vpop.f32.mrb[0].mxu0
  %v676 = vadd.f32 %v461, %v675
  %v677 = vpop.f32.mrb[0].mxu0
  %678 = vmatprep.mubr.f32.mxu0 %v509
  %679 = vmatmul.mubr.f32.gmra.mrb[0].mxu0 %v508
  %v680 = vpop.f32.mrb[0].mxu0
  %v681 = vadd.f32 %v462, %v680
  %v682 = vpop.f32.mrb[0].mxu0
  %683 = vmatprep.mubr.f32.mxu0 %v511
  %684 = vmatmul.mubr.f32.gmra.mrb[0].mxu0 %v510
  %v685 = vpop.f32.mrb[0].mxu0
  %v686 = vadd.f32 %v463, %v685
  %v687 = vpop.f32.mrb[0].mxu0
  %688 = vmatprep.mubr.f32.mxu0 %v513
  %689 = vmatmul.mubr.f32.gmra.mrb[0].mxu0 %v512
  %v690 = vpop.f32.mrb[0].mxu0
  %v691 = vadd.f32 %v464, %v690
  %v692 = vpop.f32.mrb[0].mxu0
  %693 = vmatprep.mubr.f32.mxu0 %v515
  %694 = vmatmul.mubr.f32.gmra.mrb[0].mxu0 %v514
  %v695 = vpop.f32.mrb[0].mxu0
  %v696 = vadd.f32 %v465, %v695
  %v697 = vpop.f32.mrb[0].mxu0
  %698 = vmatprep.mubr.f32.mxu0 %v517
  %699 = vmatmul.mubr.f32.gmra.mrb[0].mxu0 %v516
  %v700 = vpop.f32.mrb[0].mxu0
  %v701 = vadd.f32 %v466, %v700
  %v702 = vpop.f32.mrb[0].mxu0
  %703 = vmatprep.mubr.f32.mxu0 %v519
  %704 = vmatmul.mubr.f32.gmra.mrb[0].mxu0 %v518
  %v705 = vpop.f32.mrb[0].mxu0
  %v706 = vadd.f32 %v467, %v705
  %v707 = vpop.f32.mrb[0].mxu0
  %708 = vmatprep.mubr.f32.mxu0 %v521
  %709 = vmatmul.mubr.f32.gmra.mrb[0].mxu0 %v520
  %v710 = vpop.f32.mrb[0].mxu0
  %v711 = vadd.f32 %v468, %v710
  %v712 = vpop.f32.mrb[0].mxu0
  %713 = vmatprep.mubr.f32.mxu0 %v523
  %714 = vmatmul.mubr.f32.gmra.mrb[0].mxu0 %v522
  %v715 = vpop.f32.mrb[0].mxu0
  %v716 = vadd.f32 %v469, %v715
  %v717 = vpop.f32.mrb[0].mxu0
  %718 = vmatprep.mubr.f32.mxu0 %v525
  %719 = vmatmul.mubr.f32.gmra.mrb[0].mxu0 %v524
  %v720 = vpop.f32.mrb[0].mxu0
  %v721 = vadd.f32 %v470, %v720
  %v722 = vpop.f32.mrb[0].mxu0
  %723 = vmatprep.mubr.f32.mxu0 %v527
  %724 = vmatmul.mubr.f32.gmra.mrb[0].mxu0 %v526
  %v725 = vpop.f32.mrb[0].mxu0
  %v726 = vadd.f32 %v471, %v725
  %v727 = vpop.f32.mrb[0].mxu0
  %728 = vmatprep.mubr.f32.mxu0 %v529
  %729 = vmatmul.mubr.f32.gmra.mrb[0].mxu0 %v528
  %v730 = vpop.f32.mrb[0].mxu0
  %v731 = vadd.f32 %v472, %v730
  %v732 = vpop.f32.mrb[0].mxu0
  %733 = vmatprep.mubr.f32.mxu0 %v531
  %734 = vmatmul.mubr.f32.gmra.mrb[0].mxu0 %v530
  %v735 = vpop.f32.mrb[0].mxu0
  %v736 = vadd.f32 %v473, %v735
  %v737 = vpop.f32.mrb[0].mxu0
  %738 = vmatprep.mubr.f32.mxu0 %v533
  %739 = vmatmul.mubr.f32.gmra.mrb[0].mxu0 %v532
  %v740 = vpop.f32.mrb[0].mxu0
  %v741 = vadd.f32 %v474, %v740
  %v742 = vpop.f32.mrb[0].mxu0
  %743 = vmatprep.mubr.f32.mxu0 %v535
  %744 = vmatmul.mubr.f32.gmra.mrb[0].mxu0 %v534
  %v745 = vpop.f32.mrb[0].mxu0
  %v746 = vadd.f32 %v475, %v745
  %v747 = vpop.f32.mrb[0].mxu0
  %748 = vmatprep.mubr.f32.mxu0 %v537
  %749 = vmatmul.mubr.f32.gmra.mrb[0].mxu0 %v536
  %v750 = vpop.f32.mrb[0].mxu0
  %v751 = vadd.f32 %v476, %v750
  %v752 = vpop.f32.mrb[0].mxu0
  %753 = vmatprep.mubr.f32.mxu0 %v539
  %754 = vmatmul.mubr.f32.gmra.mrb[0].mxu0 %v538
  %v755 = vpop.f32.mrb[0].mxu0
  %v756 = vadd.f32 %v477, %v755
  %v757 = vpop.f32.mrb[0].mxu0
  %758 = vmatprep.mubr.f32.mxu0 %v541
  %759 = vmatmul.mubr.f32.gmra.mrb[0].mxu0 %v540
  %v760 = vpop.f32.mrb[0].mxu0
  %v761 = vadd.f32 %v478, %v760
  %v762 = vpop.f32.mrb[0].mxu0
  %763 = vmatprep.mubr.f32.mxu0 %v543
  %764 = vmatmul.mubr.f32.gmra.mrb[0].mxu0 %v542
  %v765 = vpop.f32.mrb[0].mxu0
  %v766 = vadd.f32 %v479, %v765
  %v767 = vpop.f32.mrb[0].mxu0
  %768 = vdwg.mxu0
  %v769 = vmax.f32 %v611, 0.0
  %v770 = vmax.f32 %v616, 0.0
  %v771 = vmax.f32 %v621, 0.0
  %v772 = vmax.f32 %v626, 0.0
  %v773 = vmax.f32 %v631, 0.0
  %v774 = vmax.f32 %v636, 0.0
  %v775 = vmax.f32 %v641, 0.0
  %v776 = vmax.f32 %v646, 0.0
  %v777 = vmax.f32 %v651, 0.0
  %v778 = vmax.f32 %v656, 0.0
  %v779 = vmax.f32 %v661, 0.0
  %v780 = vmax.f32 %v666, 0.0
  %v781 = vmax.f32 %v671, 0.0
  %v782 = vmax.f32 %v676, 0.0
  %v783 = vmax.f32 %v681, 0.0
  %v784 = vmax.f32 %v686, 0.0
  %v785 = vmax.f32 %v691, 0.0
  %v786 = vmax.f32 %v696, 0.0
  %v787 = vmax.f32 %v701, 0.0
  %v788 = vmax.f32 %v706, 0.0
  %v789 = vmax.f32 %v711, 0.0
  %v790 = vmax.f32 %v716, 0.0
  %v791 = vmax.f32 %v721, 0.0
  %v792 = vmax.f32 %v726, 0.0
  %v793 = vmax.f32 %v731, 0.0
  %v794 = vmax.f32 %v736, 0.0
  %v795 = vmax.f32 %v741, 0.0
  %v796 = vmax.f32 %v746, 0.0
  %v797 = vmax.f32 %v751, 0.0
  %v798 = vmax.f32 %v756, 0.0
  %v799 = vmax.f32 %v761, 0.0
  %v800 = vmax.f32 %v766, 0.0
  %801 = vmatprep.subr.mxu0 0.0
  %802 = vmatpush1.msra.mxu0 %v769
  %803 = vmatprep.subr.mxu0 0.0
  %804 = vmatpush1.msra.mxu0 %v770
  %805 = vmatprep.subr.mxu0 0.0
  %806 = vmatpush1.msra.mxu0 %v771
  %807 = vmatprep.subr.mxu0 0.0
  %808 = vmatpush1.msra.mxu0 %v772
  %809 = vmatprep.subr.mxu0 0.0
  %810 = vmatpush1.msra.mxu0 %v773
  %811 = vmatprep.subr.mxu0 0.0
  %812 = vmatpush1.msra.mxu0 %v774
  %813 = vmatprep.subr.mxu0 0.0
  %814 = vmatpush1.msra.mxu0 %v775
  %815 = vmatprep.subr.mxu0 0.0
  %816 = vmatpush1.msra.mxu0 %v776
  %817 = vmatprep.subr.mxu0 0.0
  %818 = vmatpush1.msra.mxu0 %v777
  %819 = vmatprep.subr.mxu0 0.0
  %820 = vmatpush1.msra.mxu0 %v778
  %821 = vmatprep.subr.mxu0 0.0
  %822 = vmatpush1.msra.mxu0 %v779
  %823 = vmatprep.subr.mxu0 0.0
  %824 = vmatpush1.msra.mxu0 %v780
  %825 = vmatprep.subr.mxu0 0.0
  %826 = vmatpush1.msra.mxu0 %v781
  %827 = vmatprep.subr.mxu0 0.0
  %828 = vmatpush1.msra.mxu0 %v782
  %829 = vmatprep.subr.mxu0 0.0
  %830 = vmatpush1.msra.mxu0 %v783
  %831 = vmatprep.subr.mxu0 0.0
  %832 = vmatpush1.msra.mxu0 %v784
  %833 = vmatprep.subr.mxu0 0.0
  %834 = vmatpush1.msra.mxu0 %v785
  %835 = vmatprep.subr.mxu0 0.0
  %836 = vmatpush1.msra.mxu0 %v786
  %837 = vmatprep.subr.mxu0 0.0
  %838 = vmatpush1.msra.mxu0 %v787
  %839 = vmatprep.subr.mxu0 0.0
  %840 = vmatpush1.msra.mxu0 %v788
  %841 = vmatprep.subr.mxu0 0.0
  %842 = vmatpush1.msra.mxu0 %v789
  %843 = vmatprep.subr.mxu0 0.0
  %844 = vmatpush1.msra.mxu0 %v790
  %845 = vmatprep.subr.mxu0 0.0
  %846 = vmatpush1.msra.mxu0 %v791
  %847 = vmatprep.subr.mxu0 0.0
  %848 = vmatpush1.msra.mxu0 %v792
  %849 = vmatprep.subr.mxu0 0.0
  %850 = vmatpush1.msra.mxu0 %v793
  %851 = vmatprep.subr.mxu0 0.0
  %852 = vmatpush1.msra.mxu0 %v794
  %853 = vmatprep.subr.mxu0 0.0
  %854 = vmatpush1.msra.mxu0 %v795
  %855 = vmatprep.subr.mxu0 0.0
  %856 = vmatpush1.msra.mxu0 %v796
  %857 = vmatprep.subr.mxu0 0.0
  %858 = vmatpush1.msra.mxu0 %v797
  %859 = vmatprep.subr.mxu0 0.0
  %860 = vmatpush1.msra.mxu0 %v798
  %861 = vmatprep.subr.mxu0 0.0
  %862 = vmatpush1.msra.mxu0 %v799
  %863 = vmatprep.subr.mxu0 0.0
  %864 = vmatpush1.msra.mxu0 %v800
  %865 = vmatprep.mubr.f32.mxu0 %v481
  %866 = vmatmul.mubr.f32.gmra.mrb[0].mxu0 %v480
  %v867 = vpop.f32.mrb[0].mxu0
  %v868 = vadd.f32 %v448, %v867
  %v869 = vpop.f32.mrb[0].mxu0
  %870 = vmatprep.mubr.f32.mxu0 %v483
  %871 = vmatmul.mubr.f32.gmra.mrb[0].mxu0 %v482
  %v872 = vpop.f32.mrb[0].mxu0
  %v873 = vadd.f32 %v449, %v872
  %v874 = vpop.f32.mrb[0].mxu0
  %875 = vmatprep.mubr.f32.mxu0 %v485
  %876 = vmatmul.mubr.f32.gmra.mrb[0].mxu0 %v484
  %v877 = vpop.f32.mrb[0].mxu0
  %v878 = vadd.f32 %v450, %v877
  %v879 = vpop.f32.mrb[0].mxu0
  %880 = vmatprep.mubr.f32.mxu0 %v487
  %881 = vmatmul.mubr.f32.gmra.mrb[0].mxu0 %v486
  %v882 = vpop.f32.mrb[0].mxu0
  %v883 = vadd.f32 %v451, %v882
  %v884 = vpop.f32.mrb[0].mxu0
  %885 = vmatprep.mubr.f32.mxu0 %v489
  %886 = vmatmul.mubr.f32.gmra.mrb[0].mxu0 %v488
  %v887 = vpop.f32.mrb[0].mxu0
  %v888 = vadd.f32 %v452, %v887
  %v889 = vpop.f32.mrb[0].mxu0
  %890 = vmatprep.mubr.f32.mxu0 %v491
  %891 = vmatmul.mubr.f32.gmra.mrb[0].mxu0 %v490
  %v892 = vpop.f32.mrb[0].mxu0
  %v893 = vadd.f32 %v453, %v892
  %v894 = vpop.f32.mrb[0].mxu0
  %895 = vmatprep.mubr.f32.mxu0 %v493
  %896 = vmatmul.mubr.f32.gmra.mrb[0].mxu0 %v492
  %v897 = vpop.f32.mrb[0].mxu0
  %v898 = vadd.f32 %v454, %v897
  %v899 = vpop.f32.mrb[0].mxu0
  %900 = vmatprep.mubr.f32.mxu0 %v495
  %901 = vmatmul.mubr.f32.gmra.mrb[0].mxu0 %v494
  %v902 = vpop.f32.mrb[0].mxu0
  %v903 = vadd.f32 %v455, %v902
  %v904 = vpop.f32.mrb[0].mxu0
  %905 = vmatprep.mubr.f32.mxu0 %v497
  %906 = vmatmul.mubr.f32.gmra.mrb[0].mxu0 %v496
  %v907 = vpop.f32.mrb[0].mxu0
  %v908 = vadd.f32 %v456, %v907
  %v909 = vpop.f32.mrb[0].mxu0
  %910 = vmatprep.mubr.f32.mxu0 %v499
  %911 = vmatmul.mubr.f32.gmra.mrb[0].mxu0 %v498
  %v912 = vpop.f32.mrb[0].mxu0
  %v913 = vadd.f32 %v457, %v912
  %v914 = vpop.f32.mrb[0].mxu0
  %915 = vmatprep.mubr.f32.mxu0 %v501
  %916 = vmatmul.mubr.f32.gmra.mrb[0].mxu0 %v500
  %v917 = vpop.f32.mrb[0].mxu0
  %v918 = vadd.f32 %v458, %v917
  %v919 = vpop.f32.mrb[0].mxu0
  %920 = vmatprep.mubr.f32.mxu0 %v503
  %921 = vmatmul.mubr.f32.gmra.mrb[0].mxu0 %v502
  %v922 = vpop.f32.mrb[0].mxu0
  %v923 = vadd.f32 %v459, %v922
  %v924 = vpop.f32.mrb[0].mxu0
  %925 = vmatprep.mubr.f32.mxu0 %v505
  %926 = vmatmul.mubr.f32.gmra.mrb[0].mxu0 %v504
  %v927 = vpop.f32.mrb[0].mxu0
  %v928 = vadd.f32 %v460, %v927
  %v929 = vpop.f32.mrb[0].mxu0
  %930 = vmatprep.mubr.f32.mxu0 %v507
  %931 = vmatmul.mubr.f32.gmra.mrb[0].mxu0 %v506
  %v932 = vpop.f32.mrb[0].mxu0
  %v933 = vadd.f32 %v461, %v932
  %v934 = vpop.f32.mrb[0].mxu0
  %935 = vmatprep.mubr.f32.mxu0 %v509
  %936 = vmatmul.mubr.f32.gmra.mrb[0].mxu0 %v508
  %v937 = vpop.f32.mrb[0].mxu0
  %v938 = vadd.f32 %v462, %v937
  %v939 = vpop.f32.mrb[0].mxu0
  %940 = vmatprep.mubr.f32.mxu0 %v511
  %941 = vmatmul.mubr.f32.gmra.mrb[0].mxu0 %v510
  %v942 = vpop.f32.mrb[0].mxu0
  %v943 = vadd.f32 %v463, %v942
  %v944 = vpop.f32.mrb[0].mxu0
  %945 = vmatprep.mubr.f32.mxu0 %v513
  %946 = vmatmul.mubr.f32.gmra.mrb[0].mxu0 %v512
  %v947 = vpop.f32.mrb[0].mxu0
  %v948 = vadd.f32 %v464, %v947
  %v949 = vpop.f32.mrb[0].mxu0
  %950 = vmatprep.mubr.f32.mxu0 %v515
  %951 = vmatmul.mubr.f32.gmra.mrb[0].mxu0 %v514
  %v952 = vpop.f32.mrb[0].mxu0
  %v953 = vadd.f32 %v465, %v952
  %v954 = vpop.f32.mrb[0].mxu0
  %955 = vmatprep.mubr.f32.mxu0 %v517
  %956 = vmatmul.mubr.f32.gmra.mrb[0].mxu0 %v516
  %v957 = vpop.f32.mrb[0].mxu0
  %v958 = vadd.f32 %v466, %v957
  %v959 = vpop.f32.mrb[0].mxu0
  %960 = vmatprep.mubr.f32.mxu0 %v519
  %961 = vmatmul.mubr.f32.gmra.mrb[0].mxu0 %v518
  %v962 = vpop.f32.mrb[0].mxu0
  %v963 = vadd.f32 %v467, %v962
  %v964 = vpop.f32.mrb[0].mxu0
  %965 = vmatprep.mubr.f32.mxu0 %v521
  %966 = vmatmul.mubr.f32.gmra.mrb[0].mxu0 %v520
  %v967 = vpop.f32.mrb[0].mxu0
  %v968 = vadd.f32 %v468, %v967
  %v969 = vpop.f32.mrb[0].mxu0
  %970 = vmatprep.mubr.f32.mxu0 %v523
  %971 = vmatmul.mubr.f32.gmra.mrb[0].mxu0 %v522
  %v972 = vpop.f32.mrb[0].mxu0
  %v973 = vadd.f32 %v469, %v972
  %v974 = vpop.f32.mrb[0].mxu0
  %975 = vmatprep.mubr.f32.mxu0 %v525
  %976 = vmatmul.mubr.f32.gmra.mrb[0].mxu0 %v524
  %v977 = vpop.f32.mrb[0].mxu0
  %v978 = vadd.f32 %v470, %v977
  %v979 = vpop.f32.mrb[0].mxu0
  %980 = vmatprep.mubr.f32.mxu0 %v527
  %981 = vmatmul.mubr.f32.gmra.mrb[0].mxu0 %v526
  %v982 = vpop.f32.mrb[0].mxu0
  %v983 = vadd.f32 %v471, %v982
  %v984 = vpop.f32.mrb[0].mxu0
  %985 = vmatprep.mubr.f32.mxu0 %v529
  %986 = vmatmul.mubr.f32.gmra.mrb[0].mxu0 %v528
  %v987 = vpop.f32.mrb[0].mxu0
  %v988 = vadd.f32 %v472, %v987
  %v989 = vpop.f32.mrb[0].mxu0
  %990 = vmatprep.mubr.f32.mxu0 %v531
  %991 = vmatmul.mubr.f32.gmra.mrb[0].mxu0 %v530
  %v992 = vpop.f32.mrb[0].mxu0
  %v993 = vadd.f32 %v473, %v992
  %v994 = vpop.f32.mrb[0].mxu0
  %995 = vmatprep.mubr.f32.mxu0 %v533
  %996 = vmatmul.mubr.f32.gmra.mrb[0].mxu0 %v532
  %v997 = vpop.f32.mrb[0].mxu0
  %v998 = vadd.f32 %v474, %v997
  %v999 = vpop.f32.mrb[0].mxu0
  %1000 = vmatprep.mubr.f32.mxu0 %v535
  %1001 = vmatmul.mubr.f32.gmra.mrb[0].mxu0 %v534
  %v1002 = vpop.f32.mrb[0].mxu0
  %v1003 = vadd.f32 %v475, %v1002
  %v1004 = vpop.f32.mrb[0].mxu0
  %1005 = vmatprep.mubr.f32.mxu0 %v537
  %1006 = vmatmul.mubr.f32.gmra.mrb[0].mxu0 %v536
  %v1007 = vpop.f32.mrb[0].mxu0
  %v1008 = vadd.f32 %v476, %v1007
  %v1009 = vpop.f32.mrb[0].mxu0
  %1010 = vmatprep.mubr.f32.mxu0 %v539
  %1011 = vmatmul.mubr.f32.gmra.mrb[0].mxu0 %v538
  %v1012 = vpop.f32.mrb[0].mxu0
  %v1013 = vadd.f32 %v477, %v1012
  %v1014 = vpop.f32.mrb[0].mxu0
  %1015 = vmatprep.mubr.f32.mxu0 %v541
  %1016 = vmatmul.mubr.f32.gmra.mrb[0].mxu0 %v540
  %v1017 = vpop.f32.mrb[0].mxu0
  %v1018 = vadd.f32 %v478, %v1017
  %v1019 = vpop.f32.mrb[0].mxu0
  %1020 = vmatprep.mubr.f32.mxu0 %v543
  %1021 = vmatmul.mubr.f32.gmra.mrb[0].mxu0 %v542
  %v1022 = vpop.f32.mrb[0].mxu0
  %v1023 = vadd.f32 %v479, %v1022
  %v1024 = vpop.f32.mrb[0].mxu0
  %1025 = vdwg.mxu0
  %v1026 = vmax.f32 %v868, 0.0
  %v1027 = vmax.f32 %v873, 0.0
  %v1028 = vmax.f32 %v878, 0.0
  %v1029 = vmax.f32 %v883, 0.0
  %v1030 = vmax.f32 %v888, 0.0
  %v1031 = vmax.f32 %v893, 0.0
  %v1032 = vmax.f32 %v898, 0.0
  %v1033 = vmax.f32 %v903, 0.0
  %v1034 = vmax.f32 %v908, 0.0
  %v1035 = vmax.f32 %v913, 0.0
  %v1036 = vmax.f32 %v918, 0.0
  %v1037 = vmax.f32 %v923, 0.0
  %v1038 = vmax.f32 %v928, 0.0
  %v1039 = vmax.f32 %v933, 0.0
  %v1040 = vmax.f32 %v938, 0.0
  %v1041 = vmax.f32 %v943, 0.0
  %v1042 = vmax.f32 %v948, 0.0
  %v1043 = vmax.f32 %v953, 0.0
  %v1044 = vmax.f32 %v958, 0.0
  %v1045 = vmax.f32 %v963, 0.0
  %v1046 = vmax.f32 %v968, 0.0
  %v1047 = vmax.f32 %v973, 0.0
  %v1048 = vmax.f32 %v978, 0.0
  %v1049 = vmax.f32 %v983, 0.0
  %v1050 = vmax.f32 %v988, 0.0
  %v1051 = vmax.f32 %v993, 0.0
  %v1052 = vmax.f32 %v998, 0.0
  %v1053 = vmax.f32 %v1003, 0.0
  %v1054 = vmax.f32 %v1008, 0.0
  %v1055 = vmax.f32 %v1013, 0.0
  %v1056 = vmax.f32 %v1018, 0.0
  %v1057 = vmax.f32 %v1023, 0.0
  %v1058 = vld [vmem:[%s5] sm:$0xff]
  %v1059 = vld [vmem:[%s5 + $0x8] sm:$0xff]
  %v1060 = vld [vmem:[%s6] sm:$0xff]
  %1061 = vmatprep.subr.mxu0 0.0
  %1062 = vmatpush1.msra.mxu0 %v1026
  %1063 = vmatprep.subr.mxu0 0.0
  %1064 = vmatpush1.msra.mxu0 %v1027
  %1065 = vmatprep.subr.mxu0 0.0
  %1066 = vmatpush1.msra.mxu0 %v1028
  %1067 = vmatprep.subr.mxu0 0.0
  %1068 = vmatpush1.msra.mxu0 %v1029
  %1069 = vmatprep.subr.mxu0 0.0
  %1070 = vmatpush1.msra.mxu0 %v1030
  %1071 = vmatprep.subr.mxu0 0.0
  %1072 = vmatpush1.msra.mxu0 %v1031
  %1073 = vmatprep.subr.mxu0 0.0
  %1074 = vmatpush1.msra.mxu0 %v1032
  %1075 = vmatprep.subr.mxu0 0.0
  %1076 = vmatpush1.msra.mxu0 %v1033
  %1077 = vmatprep.subr.mxu0 0.0
  %1078 = vmatpush1.msra.mxu0 %v1034
  %1079 = vmatprep.subr.mxu0 0.0
  %1080 = vmatpush1.msra.mxu0 %v1035
  %1081 = vmatprep.subr.mxu0 0.0
  %1082 = vmatpush1.msra.mxu0 %v1036
  %1083 = vmatprep.subr.mxu0 0.0
  %1084 = vmatpush1.msra.mxu0 %v1037
  %1085 = vmatprep.subr.mxu0 0.0
  %1086 = vmatpush1.msra.mxu0 %v1038
  %1087 = vmatprep.subr.mxu0 0.0
  %1088 = vmatpush1.msra.mxu0 %v1039
  %1089 = vmatprep.subr.mxu0 0.0
  %1090 = vmatpush1.msra.mxu0 %v1040
  %1091 = vmatprep.subr.mxu0 0.0
  %1092 = vmatpush1.msra.mxu0 %v1041
  %1093 = vmatprep.subr.mxu0 0.0
  %1094 = vmatpush1.msra.mxu0 %v1042
  %1095 = vmatprep.subr.mxu0 0.0
  %1096 = vmatpush1.msra.mxu0 %v1043
  %1097 = vmatprep.subr.mxu0 0.0
  %1098 = vmatpush1.msra.mxu0 %v1044
  %1099 = vmatprep.subr.mxu0 0.0
  %1100 = vmatpush1.msra.mxu0 %v1045
  %1101 = vmatprep.subr.mxu0 0.0
  %1102 = vmatpush1.msra.mxu0 %v1046
  %1103 = vmatprep.subr.mxu0 0.0
  %1104 = vmatpush1.msra.mxu0 %v1047
  %1105 = vmatprep.subr.mxu0 0.0
  %1106 = vmatpush1.msra.mxu0 %v1048
  %1107 = vmatprep.subr.mxu0 0.0
  %1108 = vmatpush1.msra.mxu0 %v1049
  %1109 = vmatprep.subr.mxu0 0.0
  %1110 = vmatpush1.msra.mxu0 %v1050
  %1111 = vmatprep.subr.mxu0 0.0
  %1112 = vmatpush1.msra.mxu0 %v1051
  %1113 = vmatprep.subr.mxu0 0.0
  %1114 = vmatpush1.msra.mxu0 %v1052
  %1115 = vmatprep.subr.mxu0 0.0
  %1116 = vmatpush1.msra.mxu0 %v1053
  %1117 = vmatprep.subr.mxu0 0.0
  %1118 = vmatpush1.msra.mxu0 %v1054
  %1119 = vmatprep.subr.mxu0 0.0
  %1120 = vmatpush1.msra.mxu0 %v1055
  %1121 = vmatprep.subr.mxu0 0.0
  %1122 = vmatpush1.msra.mxu0 %v1056
  %1123 = vmatprep.subr.mxu0 0.0
  %1124 = vmatpush1.msra.mxu0 %v1057
  %1125 = vmatprep.mubr.f32.mxu0 %v1059
  %1126 = vmatmul.mubr.f32.gmra.mrb[0].mxu0 %v1058
  %v1127 = vpop.f32.mrb[0].mxu0
  %v1128 = vadd.f32 %v1060, %v1127
  %v1129 = vpop.f32.mrb[0].mxu0
  %1130 = vdwg.mxu0
  %vm1131 = vcmask 7168
  %1132 = vst.msk [vmem:[%s7] sm:$0xff] %vm1131, %v1128
  // Predicated region
  $region30: #{mlp_forward.1} parent=0 // pred_check
    _
  $region31: #{mlp_forward.1} parent=0 // pred_check_branch
    %1134 = sbr.rel (0) target = $region33
  $region32: #{mlp_forward.1} parent=0 // pred_region
    _
  $region33: #{mlp_forward.1} parent=0 // pred_fallthru
    _
  // Predicated region
  $region34: #{mlp_forward.1} parent=0 // pred_check
    _
  $region35: #{mlp_forward.1} parent=0 // pred_check_branch
    %1136 = sbr.rel (0) target = $region37
  $region36: #{mlp_forward.1} parent=0 // pred_region
    _
  $region37: #{mlp_forward.1} parent=0 // pred_fallthru
    _

</llo_original>
